<compile_context>
chip_gen: v6e
topology: v6e:2x2x1
jax: 0.10.0
libtpu: 0.0.40
codegen_flags: <defaults>
</compile_context>

<pallas_src>
import functools

import jax
import jax.numpy as jnp
from jax.experimental import pallas as pl
from jax.experimental.pallas import tpu as pltpu

ALPHA = 0.25
GAMMA = 2.0

LANES = 128
BLOCK_ROWS = 2048          # (2048, 128) f32 tile = 1 MiB


def _cdiv(a, b):
    return -(-a // b)


def _round_up(a, b):
    return _cdiv(a, b) * b


def _focal_loss_kernel(x_ref, t_ref, o_ref, *, alpha, gamma):
    """Processes one (block_rows, 128) tile; accumulates into the resident
    (1, 8, 128) output block (init at step 0 of the reduction axis)."""
    step = pl.program_id(1)                 # "arbitrary" reduction axis

    x = x_ref[...].astype(jnp.float32)
    t = t_ref[...].astype(jnp.float32)

    # PyTorch's F.binary_cross_entropy clamps the log terms at -100.
    log_p = jnp.maximum(jnp.log(x), -100.0)
    log_1mp = jnp.maximum(jnp.log(1.0 - x), -100.0)
    bce = -(t * log_p + (1.0 - t) * log_1mp)

    pt = jnp.exp(-bce)
    one_minus_pt = 1.0 - pt

    g = float(gamma)
    if g == int(g) and 0 <= int(g) <= 8:
        # Integer gamma: explicit multiply chain on the VPU (gamma=2 -> square)
        gi = int(g)
        if gi == 0:
            pw = jnp.ones_like(one_minus_pt)
        else:
            pw = one_minus_pt
            for _ in range(gi - 1):
                pw = pw * one_minus_pt
    else:
        pw = jnp.power(one_minus_pt, g)     # non-integer gamma: EUP fallback

    focal = alpha * pw * bce

    # Sublane-fold the (block_rows, 128) tile down to a single (8, 128) vreg
    # with elementwise VPU adds (no cross-lane XLU reduce per tile).
    rows = focal.shape[0]
    partial = focal.reshape(rows // 8, 8, LANES).sum(axis=0)

    @pl.when(step == 0)
    def _init():
        o_ref[...] = jnp.zeros_like(o_ref)

    o_ref[...] += partial.reshape(1, 8, LANES)


def focal_loss(inputs: jax.Array, targets: jax.Array,
               alpha: float = ALPHA, gamma: float = GAMMA) -> jax.Array:
    assert inputs.shape == targets.shape
    n_elems = int(inputs.size)
    assert n_elems > 0

    # Flatten to 1-D; keep incoming dtype (cast to f32 inside the kernel).
    x = inputs.reshape(-1)
    t = targets.reshape(-1)

    rows = _cdiv(n_elems, LANES)
    if rows <= BLOCK_ROWS:
        block_rows = max(8, _round_up(rows, 8))
        num_parallel = 1
        tiles_per_core = 1
    else:
        block_rows = BLOCK_ROWS
        num_parallel = 2                    # megacore split (v7x); serial on v5e/v6e
        total_tiles = _round_up(_cdiv(rows, block_rows), num_parallel)
        tiles_per_core = total_tiles // num_parallel

    padded_rows = block_rows * tiles_per_core * num_parallel
    pad = padded_rows * LANES - n_elems
    if pad:
        # Neutral padding: x=1, t=1  ->  bce=0, pt=1, focal contribution = 0.
        x = jnp.concatenate([x, jnp.ones((pad,), dtype=x.dtype)])
        t = jnp.concatenate([t, jnp.ones((pad,), dtype=t.dtype)])

    x2 = x.reshape(padded_rows, LANES)
    t2 = t.reshape(padded_rows, LANES)

    kernel = functools.partial(_focal_loss_kernel,
                               alpha=float(alpha), gamma=float(gamma))

    in_map = lambda p, s: (p * tiles_per_core + s, 0)
    partials = pl.pallas_call(
        kernel,
        out_shape=jax.ShapeDtypeStruct((num_parallel, 8, LANES), jnp.float32),
        grid=(num_parallel, tiles_per_core),
        in_specs=[
            pl.BlockSpec((block_rows, LANES), in_map),
            pl.BlockSpec((block_rows, LANES), in_map),
        ],
        out_specs=pl.BlockSpec((1, 8, LANES), lambda p, s: (p, 0, 0)),
        compiler_params=pltpu.CompilerParams(
            dimension_semantics=("parallel", "arbitrary")),
    )(x2, t2)

    # Final tiny cross-lane reduce + mean scaling (compile-time 1/N multiply),
    # divided by the ORIGINAL element count, not the padded size.
    return jnp.sum(partials) * jnp.float32(1.0 / n_elems)


def _focal_loss_ref(inputs, targets, alpha=ALPHA, gamma=GAMMA):
    x = inputs.astype(jnp.float32)
    t = targets.astype(jnp.float32)
    log_p = jnp.maximum(jnp.log(x), -100.0)
    log_1mp = jnp.maximum(jnp.log(1.0 - x), -100.0)
    bce = -(t * log_p + (1.0 - t) * log_1mp)
    pt = jnp.exp(-bce)
    return jnp.mean(alpha * (1.0 - pt) ** gamma * bce)


if __name__ == "__main__":
    key = jax.random.PRNGKey(0)
    k1, k2, k3, k4 = jax.random.split(key, 4)

    # Small case matching the LSTM classifier head: (batch, 1) sigmoid probs.
    batch = 8
    inputs = jax.nn.sigmoid(jax.random.normal(k1, (batch, 1), dtype=jnp.float32))
    targets = jax.random.bernoulli(k2, 0.3, (batch, 1)).astype(jnp.float32)

    loss = jax.block_until_ready(focal_loss(inputs, targets))
    ref = _focal_loss_ref(inputs, targets)
    assert jnp.allclose(loss, ref, rtol=1e-5, atol=1e-6), (loss, ref)

    # Larger ragged case exercising the tiled grid, megacore split and padding.
    n_big = 600_000
    big_x = jax.random.uniform(k3, (n_big,), dtype=jnp.float32,
                               minval=1e-4, maxval=1.0 - 1e-4)
    big_t = jax.random.bernoulli(k4, 0.5, (n_big,)).astype(jnp.float32)
    big_loss = jax.block_until_ready(focal_loss(big_x, big_t))
    big_ref = _focal_loss_ref(big_x, big_t)
    assert jnp.allclose(big_loss, big_ref, rtol=5e-4, atol=1e-6), (big_loss, big_ref)

    print("KERNEL_OK")
</pallas_src>

<mosaic_0001>
module attributes {stable_mosaic.version = 11 : i64} {
  func.func @_focal_loss_kernel(%arg0: i32, %arg1: i32, %arg2: memref<8x128xf32, #tpu.memory_space<vmem>>, %arg3: memref<8x128xf32, #tpu.memory_space<vmem>>, %arg4: memref<1x8x128xf32, #tpu.memory_space<vmem>>) attributes {dimension_semantics = [#tpu.dimension_semantics<parallel>, #tpu.dimension_semantics<arbitrary>], iteration_bounds = array<i64: 1, 1>, scalar_prefetch = 0 : i64, scratch_operands = 0 : i64, tpu.core_type = #tpu.core_type<tc>, window_params = [{transform_indices = @transform_0, window_bounds = array<i64: 8, 128>}, {transform_indices = @transform_1, window_bounds = array<i64: 8, 128>}, {transform_indices = @transform_2, window_bounds = array<i64: 1, 8, 128>}]} {
    %c0 = arith.constant 0 : index
    %c0_0 = arith.constant 0 : index
    %0 = vector.load %arg2[%c0, %c0_0] : memref<8x128xf32, #tpu.memory_space<vmem>>, vector<8x128xf32>
    %c0_1 = arith.constant 0 : index
    %c0_2 = arith.constant 0 : index
    %1 = vector.load %arg3[%c0_1, %c0_2] : memref<8x128xf32, #tpu.memory_space<vmem>>, vector<8x128xf32>
    %2 = math.log %0 : vector<8x128xf32>
    %cst = arith.constant -1.000000e+02 : f32
    %3 = vector.broadcast %cst : f32 to vector<8x128xf32>
    %4 = arith.maximumf %2, %3 : vector<8x128xf32>
    %cst_3 = arith.constant 1.000000e+00 : f32
    %5 = vector.broadcast %cst_3 : f32 to vector<8x128xf32>
    %6 = arith.subf %5, %0 : vector<8x128xf32>
    %7 = math.log %6 : vector<8x128xf32>
    %cst_4 = arith.constant -1.000000e+02 : f32
    %8 = vector.broadcast %cst_4 : f32 to vector<8x128xf32>
    %9 = arith.maximumf %7, %8 : vector<8x128xf32>
    %10 = arith.mulf %1, %4 : vector<8x128xf32>
    %cst_5 = arith.constant 1.000000e+00 : f32
    %11 = vector.broadcast %cst_5 : f32 to vector<8x128xf32>
    %12 = arith.subf %11, %1 : vector<8x128xf32>
    %13 = arith.mulf %12, %9 : vector<8x128xf32>
    %14 = arith.addf %10, %13 : vector<8x128xf32>
    %cst_6 = arith.constant 0.000000e+00 : f32
    %15 = vector.broadcast %cst_6 : f32 to vector<8x128xf32>
    %16 = arith.subf %15, %14 : vector<8x128xf32>
    %cst_7 = arith.constant 0.000000e+00 : f32
    %17 = vector.broadcast %cst_7 : f32 to vector<8x128xf32>
    %18 = arith.subf %17, %16 : vector<8x128xf32>
    %19 = math.exp %18 : vector<8x128xf32>
    %cst_8 = arith.constant 1.000000e+00 : f32
    %20 = vector.broadcast %cst_8 : f32 to vector<8x128xf32>
    %21 = arith.subf %20, %19 : vector<8x128xf32>
    %22 = arith.mulf %21, %21 : vector<8x128xf32>
    %cst_9 = arith.constant 2.500000e-01 : f32
    %23 = vector.broadcast %cst_9 : f32 to vector<8x128xf32>
    %24 = arith.mulf %23, %22 : vector<8x128xf32>
    %25 = arith.mulf %24, %16 : vector<8x128xf32>
    %26 = vector.shape_cast %25 : vector<8x128xf32> to vector<1x8x128xf32>
    %cst_10 = arith.constant dense<0.000000e+00> : vector<8x128xf32>
    %27 = vector.multi_reduction <add>, %26, %cst_10 [0] : vector<1x8x128xf32> to vector<8x128xf32>
    %c0_i32 = arith.constant 0 : i32
    %28 = arith.cmpi eq, %arg1, %c0_i32 : i32
    %29 = arith.extui %28 : i1 to i32
    %c0_i32_11 = arith.constant 0 : i32
    %30 = arith.cmpi ne, %29, %c0_i32_11 : i32
    scf.if %30 {
      %cst_18 = arith.constant 0.000000e+00 : f32
      %35 = vector.broadcast %cst_18 : f32 to vector<1x8x128xf32>
      %c0_19 = arith.constant 0 : index
      %c0_20 = arith.constant 0 : index
      %c0_21 = arith.constant 0 : index
      %36 = vector.load %arg4[%c0_19, %c0_20, %c0_21] : memref<1x8x128xf32, #tpu.memory_space<vmem>>, vector<1x8x128xf32>
      tpu.vector_store %arg4[%c0_19, %c0_20, %c0_21], %35 {strides = array<i32>} : memref<1x8x128xf32, #tpu.memory_space<vmem>>, vector<1x8x128xf32>,
    } else {
    }
    %c0_12 = arith.constant 0 : index
    %c0_13 = arith.constant 0 : index
    %c0_14 = arith.constant 0 : index
    %31 = vector.load %arg4[%c0_12, %c0_13, %c0_14] : memref<1x8x128xf32, #tpu.memory_space<vmem>>, vector<1x8x128xf32>
    %32 = vector.shape_cast %27 : vector<8x128xf32> to vector<1x8x128xf32>
    %33 = arith.addf %31, %32 : vector<1x8x128xf32>
    %c0_15 = arith.constant 0 : index
    %c0_16 = arith.constant 0 : index
    %c0_17 = arith.constant 0 : index
    %34 = vector.load %arg4[%c0_15, %c0_16, %c0_17] : memref<1x8x128xf32, #tpu.memory_space<vmem>>, vector<1x8x128xf32>
    tpu.vector_store %arg4[%c0_15, %c0_16, %c0_17], %33 {strides = array<i32>} : memref<1x8x128xf32, #tpu.memory_space<vmem>>, vector<1x8x128xf32>,
    return
  }
  func.func @transform_0(%arg0: i32, %arg1: i32) -> (i32, i32) {
    %c1_i32 = arith.constant 1 : i32
    %0 = arith.muli %arg0, %c1_i32 : i32
    %1 = arith.addi %0, %arg1 : i32
    %c0_i32 = arith.constant 0 : i32
    %c0_i32_0 = arith.constant 0 : i32
    return %1, %c0_i32 : i32, i32
  }
  func.func @transform_1(%arg0: i32, %arg1: i32) -> (i32, i32) {
    %c1_i32 = arith.constant 1 : i32
    %0 = arith.muli %arg0, %c1_i32 : i32
    %1 = arith.addi %0, %arg1 : i32
    %c0_i32 = arith.constant 0 : i32
    %c0_i32_0 = arith.constant 0 : i32
    return %1, %c0_i32 : i32, i32
  }
  func.func @transform_2(%arg0: i32, %arg1: i32) -> (i32, i32, i32) {
    %c0_i32 = arith.constant 0 : i32
    %c0_i32_0 = arith.constant 0 : i32
    %c0_i32_1 = arith.constant 0 : i32
    return %arg0, %c0_i32, %c0_i32_0 : i32, i32, i32
  }
}

</mosaic_0001>

<llo_original>
// kernel: tpu_custom_call.1
$region0: #{tpu_custom_call.1}
  #allocation0 [shape = 'u32[]', space=smem, size = 0x4, offset = 0x4, fixed_abs, tag = 'smem constant byte address 0x4 - core index']
  #allocation1 [shape = 'u32[144,128]{1,0:T(1,128)}', space=vmem, size = 0x12000, scoped, tag = 'internal scratch']
  %s0 = inlined_call_operand.hbm [shape: f32[8,128], index: 0, kind: input, shape index: {}]
  %s1 = inlined_call_operand.hbm [shape: f32[8,128], index: 1, kind: input, shape index: {}]
  %s2 = inlined_call_operand.hbm [shape: f32[1,8,128], index: 2, kind: output, shape index: {}]
  %s3 = sld [smem:[#allocation0]]
  $region30: #{tpu_custom_call.1} parent=0
    _
  %s5 = ssub.s32 1, %s3
  %s6 = scalar_select 0, %s5, %s3
  $region1: #{tpu_custom_call.1} parent=0
    #allocation2 [shape = 'u8[4096]{0}', space=vmem, size = 0x1000, scoped, tag = 'input window, operand 0, single buffered']
    #allocation3 [shape = 's32[1]{0}', space=sflag, size = 0x4, scoped, tag = 'scoped memory for tpu_custom_call.1']
    #allocation4 [shape = 's32[1]{0}', space=sflag, size = 0x4, scoped, tag = 'scoped memory for tpu_custom_call.1']
    #allocation5 [shape = 'u8[4096]{0}', space=vmem, size = 0x1000, scoped, tag = 'input window, operand 1, single buffered']
    #allocation6 [shape = 's32[1]{0}', space=sflag, size = 0x4, scoped, tag = 'scoped memory for tpu_custom_call.1']
    #allocation7 [shape = 'u8[4096]{0}', space=vmem, size = 0x1000, scoped, tag = 'output window, operand 0, single buffered']
    %7 = vsyncpa [#allocation3], 0
    %8 = vsyncpa [#allocation6], 0
    %9 = vsyncpa [#allocation4], 0
    // Predicated region
    $region2: #{tpu_custom_call.1} parent=1 // pred_check
      _
    $region3: #{tpu_custom_call.1} parent=1 // pred_check_branch
      %11 = sbr.rel (0) target = $region5
    $region4: #{tpu_custom_call.1} parent=1 // pred_region
      %s12 = sadd.s32 0, 0
      %s14 = ssub.s32 128, 128
      %15 = vsyncadd [#allocation3], %s14
      %s16 = smul.addr %s12, 128
      %s17 = scalar_lea.hbm %s0, %s16
      %s19 = sshll.u32 [#allocation2], 4
      %s20 = int_to_ptr.vmem [resolvable:$true] %s19
      %22 = dma.hbm_to_vmem [thread:$0]  %s17, 128, %s20, [#allocation3]
    $region5: #{tpu_custom_call.1} parent=1 // pred_fallthru
      _
    // Predicated region
    $region6: #{tpu_custom_call.1} parent=1 // pred_check
      _
    $region7: #{tpu_custom_call.1} parent=1 // pred_check_branch
      %24 = sbr.rel (0) target = $region9
    $region8: #{tpu_custom_call.1} parent=1 // pred_region
      %s25 = sadd.s32 0, 0
      %s27 = ssub.s32 128, 128
      %28 = vsyncadd [#allocation6], %s27
      %s29 = smul.addr %s25, 128
      %s30 = scalar_lea.hbm %s1, %s29
      %s32 = sshll.u32 [#allocation5], 4
      %s33 = int_to_ptr.vmem [resolvable:$true] %s32
      %35 = dma.hbm_to_vmem [thread:$0]  %s30, 128, %s33, [#allocation6]
    $region9: #{tpu_custom_call.1} parent=1 // pred_fallthru
      _
    // Predicated region
    $region10: #{tpu_custom_call.1} parent=1 // pred_check
      _
    $region11: #{tpu_custom_call.1} parent=1 // pred_check_branch
      %37 = sbr.rel (0) target = $region13
    $region12: #{tpu_custom_call.1} parent=1 // pred_region
      %38 = dma.done [#allocation3], 128
    $region13: #{tpu_custom_call.1} parent=1 // pred_fallthru
      _
    // Predicated region
    $region14: #{tpu_custom_call.1} parent=1 // pred_check
      _
    $region15: #{tpu_custom_call.1} parent=1 // pred_check_branch
      %40 = sbr.rel (0) target = $region17
    $region16: #{tpu_custom_call.1} parent=1 // pred_region
      %41 = dma.done [#allocation6], 128
    $region17: #{tpu_custom_call.1} parent=1 // pred_fallthru
      _
    %s42 = sadd.s32 0, 0
    %s43 = sadd.s32 0, 0
    %v44 = vld [vmem:[#allocation2] sm:$0xff]
    %v45 = vld [vmem:[#allocation5] sm:$0xff]
    %v46 = vlog2.pop %v44
    %v47 = vmul.f32 %v46, 0.6931472
    %v48 = vmax.f32 %v47, -100.0
    %v49 = vsub.f32 1.0, %v44
    %v50 = vlog2.pop %v49
    %v51 = vmul.f32 %v50, 0.6931472
    %v52 = vmax.f32 %v51, -100.0
    %v53 = vmul.f32 %v45, %v48
    %v54 = vsub.f32 1.0, %v45
    %v55 = vmul.f32 %v54, %v52
    %v56 = vadd.f32 %v53, %v55
    %v57 = vsub.f32 0.0, %v56
    %v58 = vsub.f32 0.0, %v57
    %v59 = vmul.f32 %v58, 1.442695
    %v60 = vpow.pop %v59
    %v61 = vsub.f32 1.0, %v60
    %v62 = vmul.f32 %v61, %v61
    %v63 = vmul.f32 %v62, 0.25
    %v64 = vmul.f32 %v63, %v57
    %v65 = vadd.f32 %v64, 0.0
    %p66 = scmp.eq.s32.totalorder 0, 0
    // Predicated region
    $region18: #{tpu_custom_call.1} parent=1 // pred_check
      %p67 = pneg %p66
    $region19: #{tpu_custom_call.1} parent=1 // pred_check_branch
      %69 = sbr.rel (%p67) target = $region21
    $region20: #{tpu_custom_call.1} parent=1 // pred_region
      %70 = vst [vmem:[#allocation7] sm:$0xff] 0.0
    $region21: #{tpu_custom_call.1} parent=1 // pred_fallthru
      _
    %v71 = vld [vmem:[#allocation7] sm:$0xff]
    %v72 = vadd.f32 %v71, %v65
    %73 = vst [vmem:[#allocation7] sm:$0xff] %v72
    // Predicated region
    $region22: #{tpu_custom_call.1} parent=1 // pred_check
      _
    $region23: #{tpu_custom_call.1} parent=1 // pred_check_branch
      %75 = sbr.rel (0) target = $region25
    $region24: #{tpu_custom_call.1} parent=1 // pred_region
      %s77 = ssub.s32 128, 128
      %78 = vsyncadd [#allocation4], %s77
      %s80 = sshll.u32 [#allocation7], 4
      %s81 = int_to_ptr.vmem [resolvable:$true] %s80
      %83 = dma.vmem_to_hbm [thread:$0]  %s81, 128, %s2, [#allocation4]
    $region25: #{tpu_custom_call.1} parent=1 // pred_fallthru
      _
    // Predicated region
    $region26: #{tpu_custom_call.1} parent=1 // pred_check
      _
    $region27: #{tpu_custom_call.1} parent=1 // pred_check_branch
      %85 = sbr.rel (0) target = $region29
    $region28: #{tpu_custom_call.1} parent=1 // pred_region
      %86 = dma.done [#allocation4], 128
    $region29: #{tpu_custom_call.1} parent=1 // pred_fallthru
      _
    %87 = vsyncpa [#allocation3], 1
    %88 = vsyncpa [#allocation6], 1
    %89 = vsyncpa [#allocation4], 1

</llo_original>
